<compile_context>
chip_gen: v7x
topology: tpu7x:2x2x1
jax: 0.10.0
libtpu: 0.0.40
codegen_flags: <defaults>
</compile_context>

<pallas_src>
from functools import partial

import jax
import jax.numpy as jnp
from jax.experimental import pallas as pl
from jax.experimental.pallas import tpu as pltpu


# ----------------------------------------------------------------------------
# Kernel 1: default path -- fused projections + scaled dot-product attention.
# ----------------------------------------------------------------------------
def _mha_dot_kernel(q_ref, k_ref, v_ref, wq_ref, wk_ref, out_ref, *, inv_temperature):
    # q_ref:  (TB, N, d_model)      k_ref: (TB, N, Kk, d_model)
    # v_ref:  (TB, N, Kk, d_v)      wq_ref/wk_ref: (d_model, d_k)  (pre-transposed)
    # out_ref:(TB, N, d_v)
    tb, n, dm = q_ref.shape
    kk = k_ref.shape[2]
    dv = v_ref.shape[3]
    dk = wq_ref.shape[1]
    rows = tb * n

    q2d = q_ref[...].reshape(rows, dm)
    k2d = k_ref[...].reshape(rows * kk, dm)
    v3 = v_ref[...].reshape(rows, kk, dv)

    # Fused projections: two lane-dense MXU matmuls over all rows of the tile.
    q1 = jnp.dot(q2d, wq_ref[...], preferred_element_type=jnp.float32)      # (rows, dk)
    kp = jnp.dot(k2d, wk_ref[...], preferred_element_type=jnp.float32)      # (rows*kk, dk)
    kp = kp.reshape(rows, kk, dk)

    # scores[r, m] = <q1[r] / T, kp[r, m]>   (torch matmul broadcast => len_q == len_k)
    s = jnp.sum(q1[:, None, :] * kp, axis=-1) * inv_temperature             # (rows, kk)

    # softmax over the key axis (lane axis).
    mx = jnp.max(s, axis=-1, keepdims=True)
    e = jnp.exp(s - mx)
    p = e / jnp.sum(e, axis=-1, keepdims=True)
    # TODO(synk): attention dropout (p=0.1) is identity in eval mode; not applied.
    # TODO(synk): mask != None branch (masked_fill -1e9) not wired; default mask=None.

    # output = matmul(attn, v).sum(2)  ==  sum_m p[r, m] * v[r, m, :]
    out = jnp.sum(p[:, :, None] * v3, axis=1)                               # (rows, dv)
    out_ref[...] = out.reshape(tb, n, dv).astype(out_ref.dtype)


# ----------------------------------------------------------------------------
# Kernel 2a: 'bi' path -- fused projections + bilinear attention logits.
# ----------------------------------------------------------------------------
def _mha_bi_logits_kernel(q_ref, k_ref, wq_ref, wk_ref, bw_ref, bb_ref, out_ref):
    # bw_ref: (H, d_k, d_k)   bb_ref: (1, H)   out_ref: (TB, N, Kk, H)
    tb, n, dm = q_ref.shape
    kk = k_ref.shape[2]
    h, dk, _ = bw_ref.shape
    rows = tb * n

    q2d = q_ref[...].reshape(rows, dm)
    k2d = k_ref[...].reshape(rows * kk, dm)

    q1 = jnp.dot(q2d, wq_ref[...], preferred_element_type=jnp.float32)      # (rows, dk)
    kp = jnp.dot(k2d, wk_ref[...], preferred_element_type=jnp.float32)      # (rows*kk, dk)
    kp = kp.reshape(rows, kk, dk)

    w = bw_ref[...]                                                          # (h, dk, dk)
    # t[r, hh, j] = sum_i q1[r, i] * W[hh, i, j]   (vectorized over all heads)
    t = jnp.sum(q1[:, None, :, None] * w[None, :, :, :], axis=2)             # (rows, h, dk)
    # bil[r, m, hh] = sum_j kp[r, m, j] * t[r, hh, j] + b[hh]
    bil = jnp.sum(kp[:, :, None, :] * t[:, None, :, :], axis=-1)             # (rows, kk, h)
    bil = bil + bb_ref[...]                                                  # (1, h) broadcast

    out_ref[...] = bil.reshape(tb, n, kk, h).astype(out_ref.dtype)


# ----------------------------------------------------------------------------
# Kernel 2b: 'bi' path -- softmax over the reinterpreted view + value reduction.
# ----------------------------------------------------------------------------
def _mha_bi_softmax_out_kernel(a_ref, v_ref, out_ref):
    # a_ref: (TB, N, H, Kk)  (already reinterpreted like torch's .view(B,N,-1,K))
    # v_ref: (TB, N, Kk, d_v)   out_ref: (TB, N, d_v)
    tb, n, h, kk = a_ref.shape
    dv = v_ref.shape[3]
    rows = tb * n

    a = a_ref[...].reshape(rows, h, kk)
    mx = jnp.max(a, axis=-1, keepdims=True)
    e = jnp.exp(a - mx)
    p = e / jnp.sum(e, axis=-1, keepdims=True)                               # (rows, h, kk)
    # TODO(synk): attention dropout (p=0.1) is identity in eval mode; not applied.

    # matmul(attn, v).sum(2): sum over heads first, then one weighted value sum.
    p_sum = jnp.sum(p, axis=1)                                               # (rows, kk)
    v3 = v_ref[...].reshape(rows, kk, dv)
    out = jnp.sum(p_sum[:, :, None] * v3, axis=1)                            # (rows, dv)
    out_ref[...] = out.reshape(tb, n, dv).astype(out_ref.dtype)


# ----------------------------------------------------------------------------
# Wrapper: MultiHeadAttention.forward (returns (output, q_2)).
# ----------------------------------------------------------------------------
def multi_head_attention(q, k, v, w_qs, w_ks, bil_w, bil_b, *, attn="dot",
                         temperature=1.0, block_b=1):
    """q: (B, N, d_model); k: (B, N, Kk, d_model); v: (B, N, Kk, d_v).
    w_qs/w_ks: (d_k, d_model) nn.Linear weights (no bias).
    bil_w: (n_head, d_k, d_k), bil_b: (n_head,) -- nn.Bilinear params ('bi' path)."""
    B, Nq, dm = q.shape
    _, Nk, Kk, dmk = k.shape
    dv = v.shape[-1]
    dk = w_qs.shape[0]
    assert Nq == Nk and dmk == dm, "torch matmul broadcast requires len_q == len_k"
    assert B % block_b == 0
    grid = (B // block_b,)
    params = pltpu.CompilerParams(dimension_semantics=("parallel",))

    # Pre-transpose projection weights so the in-kernel matmuls are lane-dense.
    wq_t = w_qs.T                                                            # (dm, dk)
    wk_t = w_ks.T                                                            # (dm, dk)

    if attn == "dot":
        out = pl.pallas_call(
            partial(_mha_dot_kernel, inv_temperature=1.0 / temperature),
            out_shape=jax.ShapeDtypeStruct((B, Nq, dv), jnp.float32),
            grid_spec=pl.GridSpec(
                grid=grid,
                in_specs=[
                    pl.BlockSpec((block_b, Nq, dm), lambda b: (b, 0, 0)),
                    pl.BlockSpec((block_b, Nk, Kk, dm), lambda b: (b, 0, 0, 0)),
                    pl.BlockSpec((block_b, Nk, Kk, dv), lambda b: (b, 0, 0, 0)),
                    pl.BlockSpec((dm, dk), lambda b: (0, 0)),
                    pl.BlockSpec((dm, dk), lambda b: (0, 0)),
                ],
                out_specs=pl.BlockSpec((block_b, Nq, dv), lambda b: (b, 0, 0)),
            ),
            compiler_params=params,
        )(q, k, v, wq_t, wk_t)
    else:  # attn == "bi"
        H = bil_w.shape[0]
        bias2d = bil_b.reshape(1, H)
        logits = pl.pallas_call(
            _mha_bi_logits_kernel,
            out_shape=jax.ShapeDtypeStruct((B, Nq, Kk, H), jnp.float32),
            grid_spec=pl.GridSpec(
                grid=grid,
                in_specs=[
                    pl.BlockSpec((block_b, Nq, dm), lambda b: (b, 0, 0)),
                    pl.BlockSpec((block_b, Nk, Kk, dm), lambda b: (b, 0, 0, 0)),
                    pl.BlockSpec((dm, dk), lambda b: (0, 0)),
                    pl.BlockSpec((dm, dk), lambda b: (0, 0)),
                    pl.BlockSpec((H, dk, dk), lambda b: (0, 0, 0)),
                    pl.BlockSpec((1, H), lambda b: (0, 0)),
                ],
                out_specs=pl.BlockSpec((block_b, Nq, Kk, H), lambda b: (b, 0, 0, 0)),
            ),
            compiler_params=params,
        )(q, k, wq_t, wk_t, bil_w, bias2d)

        # torch's `.view(B, N, -1, K)`: pure flat-memory reinterpretation (kk,h)->(h',kk').
        attn_view = logits.reshape(B, Nq, H, Kk)

        out = pl.pallas_call(
            _mha_bi_softmax_out_kernel,
            out_shape=jax.ShapeDtypeStruct((B, Nq, dv), jnp.float32),
            grid_spec=pl.GridSpec(
                grid=grid,
                in_specs=[
                    pl.BlockSpec((block_b, Nq, H, Kk), lambda b: (b, 0, 0, 0)),
                    pl.BlockSpec((block_b, Nk, Kk, dv), lambda b: (b, 0, 0, 0)),
                ],
                out_specs=pl.BlockSpec((block_b, Nq, dv), lambda b: (b, 0, 0)),
            ),
            compiler_params=params,
        )(attn_view, v)

    q_2 = q.reshape(B, Nq, -1)   # torch: q.view(sz_b, len_q, -1)  (identity)
    return out, q_2


# ----------------------------------------------------------------------------
# Pure-JAX reference mirroring the PyTorch forward (for validation only).
# ----------------------------------------------------------------------------
def mha_ref(q, k, v, w_qs, w_ks, bil_w, bil_b, attn="dot", temperature=1.0):
    hp = jax.lax.Precision.HIGHEST
    B, N, _ = q.shape
    Kk = k.shape[2]
    q1 = jnp.einsum("bnd,kd->bnk", q, w_qs, precision=hp)
    kp = jnp.einsum("bnmd,kd->bnmk", k, w_ks, precision=hp)
    if attn == "dot":
        s = jnp.einsum("bnd,bnmd->bnm", q1 / temperature, kp, precision=hp)
        p = jax.nn.softmax(s, axis=-1)
        out = jnp.einsum("bnm,bnmd->bnd", p, v, precision=hp)
    else:
        H = bil_w.shape[0]
        bil = jnp.einsum("bni,hij,bnmj->bnmh", q1, bil_w, kp, precision=hp) + bil_b
        a = bil.reshape(B, N, H, Kk)            # torch .view(B, N, -1, K)
        p = jax.nn.softmax(a, axis=-1)
        out = jnp.einsum("bnhm,bnmd->bnhd", p, v, precision=hp).sum(axis=2)
    return out, q.reshape(B, N, -1)


if __name__ == "__main__":
    # Small shapes consistent with the module: batch=2, seq(len_q=len_k)=8,
    # keys-per-position len_kk=16, d_model=32, d_k=16, d_v=16, n_head=4.
    B, N, Kk, d_model, d_k, d_v, n_head = 2, 8, 16, 32, 16, 16, 4

    key = jax.random.PRNGKey(0)
    kq, kk_, kv, kwq, kwk, kbw, kbb = jax.random.split(key, 7)

    q = jax.random.normal(kq, (B, N, d_model), jnp.float32)
    k = jax.random.normal(kk_, (B, N, Kk, d_model), jnp.float32)
    v = jax.random.normal(kv, (B, N, Kk, d_v), jnp.float32)

    # nn.Linear / nn.Bilinear default init bounds (deterministic values via PRNGKey(0)).
    b_lin = 1.0 / (d_model ** 0.5)
    w_qs = jax.random.uniform(kwq, (d_k, d_model), jnp.float32, -b_lin, b_lin)
    w_ks = jax.random.uniform(kwk, (d_k, d_model), jnp.float32, -b_lin, b_lin)
    b_bil = 1.0 / (d_k ** 0.5)
    bil_w = jax.random.uniform(kbw, (n_head, d_k, d_k), jnp.float32, -b_bil, b_bil)
    bil_b = jax.random.uniform(kbb, (n_head,), jnp.float32, -b_bil, b_bil)

    # Default path ('dot') and the alternative 'bi' path.
    out_dot, q2_dot = multi_head_attention(q, k, v, w_qs, w_ks, bil_w, bil_b, attn="dot")
    out_bi, q2_bi = multi_head_attention(q, k, v, w_qs, w_ks, bil_w, bil_b, attn="bi")
    jax.block_until_ready((out_dot, q2_dot, out_bi, q2_bi))

    ref_out_dot, ref_q2 = mha_ref(q, k, v, w_qs, w_ks, bil_w, bil_b, attn="dot")
    ref_out_bi, _ = mha_ref(q, k, v, w_qs, w_ks, bil_w, bil_b, attn="bi")

    assert out_dot.shape == (B, N, d_v) and q2_dot.shape == (B, N, d_model)
    assert out_bi.shape == (B, N, d_v)
    assert jnp.allclose(out_dot, ref_out_dot, rtol=2e-3, atol=2e-3)
    assert jnp.allclose(out_bi, ref_out_bi, rtol=2e-3, atol=2e-3)
    assert jnp.allclose(q2_dot, ref_q2) and jnp.allclose(q2_bi, ref_q2)

    print("KERNEL_OK")
</pallas_src>

<mosaic_0001>
module attributes {stable_mosaic.version = 11 : i64} {
  func.func @_mha_dot_kernel(%arg0: i32, %arg1: memref<1x8x32xf32, #tpu.memory_space<vmem>>, %arg2: memref<1x8x16x32xf32, #tpu.memory_space<vmem>>, %arg3: memref<1x8x16x16xf32, #tpu.memory_space<vmem>>, %arg4: memref<32x16xf32, #tpu.memory_space<vmem>>, %arg5: memref<32x16xf32, #tpu.memory_space<vmem>>, %arg6: memref<1x8x16xf32, #tpu.memory_space<vmem>>) attributes {dimension_semantics = [#tpu.dimension_semantics<parallel>], iteration_bounds = array<i64: 2>, scalar_prefetch = 0 : i64, scratch_operands = 0 : i64, tpu.core_type = #tpu.core_type<tc>, window_params = [{transform_indices = @transform_0, window_bounds = array<i64: 1, 8, 32>}, {transform_indices = @transform_1, window_bounds = array<i64: 1, 8, 16, 32>}, {transform_indices = @transform_2, window_bounds = array<i64: 1, 8, 16, 16>}, {pipeline_mode = #tpu.pipeline_mode<synchronous>, transform_indices = @transform_3, window_bounds = array<i64: 32, 16>}, {pipeline_mode = #tpu.pipeline_mode<synchronous>, transform_indices = @transform_4, window_bounds = array<i64: 32, 16>}, {transform_indices = @transform_5, window_bounds = array<i64: 1, 8, 16>}]} {
    %c0 = arith.constant 0 : index
    %c0_0 = arith.constant 0 : index
    %c0_1 = arith.constant 0 : index
    %0 = vector.load %arg1[%c0, %c0_0, %c0_1] : memref<1x8x32xf32, #tpu.memory_space<vmem>>, vector<1x8x32xf32>
    %1 = vector.shape_cast %0 : vector<1x8x32xf32> to vector<8x32xf32>
    %c0_2 = arith.constant 0 : index
    %c0_3 = arith.constant 0 : index
    %c0_4 = arith.constant 0 : index
    %c0_5 = arith.constant 0 : index
    %2 = vector.load %arg2[%c0_2, %c0_3, %c0_4, %c0_5] : memref<1x8x16x32xf32, #tpu.memory_space<vmem>>, vector<1x8x16x32xf32>
    %3 = vector.shape_cast %2 : vector<1x8x16x32xf32> to vector<128x32xf32>
    %c0_6 = arith.constant 0 : index
    %c0_7 = arith.constant 0 : index
    %c0_8 = arith.constant 0 : index
    %c0_9 = arith.constant 0 : index
    %4 = vector.load %arg3[%c0_6, %c0_7, %c0_8, %c0_9] : memref<1x8x16x16xf32, #tpu.memory_space<vmem>>, vector<1x8x16x16xf32>
    %5 = vector.shape_cast %4 : vector<1x8x16x16xf32> to vector<8x16x16xf32>
    %c0_10 = arith.constant 0 : index
    %c0_11 = arith.constant 0 : index
    %6 = vector.load %arg4[%c0_10, %c0_11] : memref<32x16xf32, #tpu.memory_space<vmem>>, vector<32x16xf32>
    %cst = arith.constant dense<0.000000e+00> : vector<8x16xf32>
    %7 = tpu.matmul %1, %6, %cst {dimension_numbers = #tpu.dot_dimension_numbers<[1], [0], [0], [1], [0, 0, 1, 1], [], []>} : vector<8x32xf32>, vector<32x16xf32>, vector<8x16xf32> -> vector<8x16xf32>
    %c0_12 = arith.constant 0 : index
    %c0_13 = arith.constant 0 : index
    %8 = vector.load %arg5[%c0_12, %c0_13] : memref<32x16xf32, #tpu.memory_space<vmem>>, vector<32x16xf32>
    %cst_14 = arith.constant dense<0.000000e+00> : vector<128x16xf32>
    %9 = tpu.matmul %3, %8, %cst_14 {dimension_numbers = #tpu.dot_dimension_numbers<[1], [0], [0], [1], [0, 0, 1, 1], [], []>} : vector<128x32xf32>, vector<32x16xf32>, vector<128x16xf32> -> vector<128x16xf32>
    %10 = vector.shape_cast %9 : vector<128x16xf32> to vector<8x16x16xf32>
    %11 = vector.shape_cast %7 : vector<8x16xf32> to vector<8x1x16xf32>
    %12 = vector.broadcast %11 : vector<8x1x16xf32> to vector<8x16x16xf32>
    %13 = arith.mulf %12, %10 : vector<8x16x16xf32>
    %cst_15 = arith.constant dense<0.000000e+00> : vector<8x16xf32>
    %14 = vector.multi_reduction <add>, %13, %cst_15 [2] : vector<8x16x16xf32> to vector<8x16xf32>
    %cst_16 = arith.constant 1.000000e+00 : f32
    %15 = vector.broadcast %cst_16 : f32 to vector<8x16xf32>
    %16 = arith.mulf %14, %15 : vector<8x16xf32>
    %cst_17 = arith.constant dense<0xFF800000> : vector<8xf32>
    %17 = vector.multi_reduction <maximumf>, %16, %cst_17 [1] : vector<8x16xf32> to vector<8xf32>
    %18 = vector.shape_cast %17 : vector<8xf32> to vector<8x1xf32>
    %19 = vector.broadcast %18 : vector<8x1xf32> to vector<8x16xf32>
    %20 = arith.subf %16, %19 : vector<8x16xf32>
    %21 = math.exp %20 : vector<8x16xf32>
    %cst_18 = arith.constant dense<0.000000e+00> : vector<8xf32>
    %22 = vector.multi_reduction <add>, %21, %cst_18 [1] : vector<8x16xf32> to vector<8xf32>
    %23 = vector.shape_cast %22 : vector<8xf32> to vector<8x1xf32>
    %24 = vector.broadcast %23 : vector<8x1xf32> to vector<8x16xf32>
    %25 = arith.divf %21, %24 : vector<8x16xf32>
    %26 = vector.shape_cast %25 : vector<8x16xf32> to vector<8x16x1xf32>
    %27 = vector.broadcast %26 : vector<8x16x1xf32> to vector<8x16x16xf32>
    %28 = arith.mulf %27, %5 : vector<8x16x16xf32>
    %cst_19 = arith.constant dense<0.000000e+00> : vector<8x16xf32>
    %29 = vector.multi_reduction <add>, %28, %cst_19 [1] : vector<8x16x16xf32> to vector<8x16xf32>
    %30 = vector.shape_cast %29 : vector<8x16xf32> to vector<1x8x16xf32>
    %c0_20 = arith.constant 0 : index
    %c0_21 = arith.constant 0 : index
    %c0_22 = arith.constant 0 : index
    %31 = vector.load %arg6[%c0_20, %c0_21, %c0_22] : memref<1x8x16xf32, #tpu.memory_space<vmem>>, vector<1x8x16xf32>
    tpu.vector_store %arg6[%c0_20, %c0_21, %c0_22], %30 {strides = array<i32>} : memref<1x8x16xf32, #tpu.memory_space<vmem>>, vector<1x8x16xf32>,
    return
  }
  func.func @transform_0(%arg0: i32) -> (i32, i32, i32) {
    %c0_i32 = arith.constant 0 : i32
    %c0_i32_0 = arith.constant 0 : i32
    %c0_i32_1 = arith.constant 0 : i32
    return %arg0, %c0_i32, %c0_i32_0 : i32, i32, i32
  }
  func.func @transform_1(%arg0: i32) -> (i32, i32, i32, i32) {
    %c0_i32 = arith.constant 0 : i32
    %c0_i32_0 = arith.constant 0 : i32
    %c0_i32_1 = arith.constant 0 : i32
    %c0_i32_2 = arith.constant 0 : i32
    return %arg0, %c0_i32, %c0_i32_0, %c0_i32_1 : i32, i32, i32, i32
  }
  func.func @transform_2(%arg0: i32) -> (i32, i32, i32, i32) {
    %c0_i32 = arith.constant 0 : i32
    %c0_i32_0 = arith.constant 0 : i32
    %c0_i32_1 = arith.constant 0 : i32
    %c0_i32_2 = arith.constant 0 : i32
    return %arg0, %c0_i32, %c0_i32_0, %c0_i32_1 : i32, i32, i32, i32
  }
  func.func @transform_3(%arg0: i32) -> (i32, i32) {
    %c0_i32 = arith.constant 0 : i32
    %c0_i32_0 = arith.constant 0 : i32
    %c0_i32_1 = arith.constant 0 : i32
    return %c0_i32, %c0_i32_0 : i32, i32
  }
  func.func @transform_4(%arg0: i32) -> (i32, i32) {
    %c0_i32 = arith.constant 0 : i32
    %c0_i32_0 = arith.constant 0 : i32
    %c0_i32_1 = arith.constant 0 : i32
    return %c0_i32, %c0_i32_0 : i32, i32
  }
  func.func @transform_5(%arg0: i32) -> (i32, i32, i32) {
    %c0_i32 = arith.constant 0 : i32
    %c0_i32_0 = arith.constant 0 : i32
    %c0_i32_1 = arith.constant 0 : i32
    return %arg0, %c0_i32, %c0_i32_0 : i32, i32, i32
  }
}

</mosaic_0001>

<llo_original>
// kernel: tpu_custom_call.1
$region0: #{tpu_custom_call.1}
  #allocation0 [shape = 'u32[]', space=smem, size = 0x4, offset = 0x4, fixed_abs, tag = 'smem constant byte address 0x4 - core index']
  #allocation1 [shape = 'u32[144,128]{1,0:T(1,128)}', space=vmem, size = 0x12000, scoped, tag = 'internal scratch']
  %s0 = inlined_call_operand.vmem [shape: f32[2,8,32], index: 0, kind: input, shape index: {}]
  %s1 = inlined_call_operand.hbm [shape: f32[2,8,16,32], index: 1, kind: input, shape index: {}]
  %s2 = inlined_call_operand.hbm [shape: f32[2,8,16,16], index: 2, kind: input, shape index: {}]
  %s3 = inlined_call_operand.vmem [shape: f32[32,16], index: 3, kind: input, shape index: {}]
  %s4 = inlined_call_operand.vmem [shape: f32[32,16], index: 4, kind: input, shape index: {}]
  %s5 = inlined_call_operand.hbm [shape: f32[2,8,16], index: 5, kind: output, shape index: {}]
  %s6 = sld [smem:[#allocation0]]
  $region61: #{tpu_custom_call.1} parent=0
    _
  %s8 = ssub.s32 1, %s6
  %s9 = scalar_select 0, %s8, %s6
  $region1: #{tpu_custom_call.1} parent=0
    #allocation2 [shape = 'u8[131072]{0}', space=vmem, size = 0x20000, scoped, tag = 'input window, operand 1']
    #allocation3 [shape = 's32[2]{0}', space=sflag, size = 0x8, scoped, tag = 'scoped memory for tpu_custom_call.1']
    #allocation4 [shape = 's32[2]{0}', space=sflag, size = 0x8, scoped, tag = 'scoped memory for tpu_custom_call.1']
    #allocation5 [shape = 'u8[131072]{0}', space=vmem, size = 0x20000, scoped, tag = 'input window, operand 2']
    #allocation6 [shape = 's32[2]{0}', space=sflag, size = 0x8, scoped, tag = 'scoped memory for tpu_custom_call.1']
    #allocation7 [shape = 'u8[8192]{0}', space=vmem, size = 0x2000, scoped, tag = 'output window, operand 0']
    %10 = vsyncpa [#allocation3], 0
    %s11 = scalar_lea.sflag [#allocation3], 1
    %12 = vsyncpa %s11, 0
    %13 = vsyncpa [#allocation6], 0
    %s14 = scalar_lea.sflag [#allocation6], 1
    %15 = vsyncpa %s14, 0
    %16 = vsyncpa [#allocation4], 0
    %s17 = scalar_lea.sflag [#allocation4], 1
    %18 = vsyncpa %s17, 0
    loop: start=0, step=1, limit=4
    $region2: #{tpu_custom_call.1} parent=1 // loop_pre_header
      _
    $region3: #{tpu_custom_call.1} parent=1 // loop_header
      %s20 = sphi 0, %s24
      %p21 = scmp.ge.s32.totalorder %s20, 4
      %s30 = sphi 0, %s32
      %s33 = sphi 0, %s30
      %s34 = sphi 0, %s33
      %s50 = sphi 0, %s34
      %s56 = sphi 0, %s58
      %s59 = sphi 0, %s56
      %s60 = sphi 0, %s59
      %s76 = sphi 0, %s60
      %s82 = sphi 0, %s84
      %s85 = sphi 0, %s82
      %s86 = sphi 0, %s85
      %s102 = sphi 0, %s86
      %s106 = sphi 0, %s106
      %s108 = sphi 0, %s106
      %s109 = sphi 0, %s108
      %s123 = sphi 0, %s109
      %s127 = sphi 0, %s127
      %s129 = sphi 0, %s127
      %s130 = sphi 0, %s129
      %s144 = sphi 0, %s130
      %s150 = sphi 0, %s152
      %s153 = sphi 0, %s150
      %s154 = sphi 0, %s153
      %s170 = sphi 0, %s154
    $region4: #{tpu_custom_call.1} parent=1 // loop_header_branch
      %23 = sbr.rel (%p21) target = $region8
    $region5: #{tpu_custom_call.1} parent=1 // loop_body
      %s25 = ssub.s32 %s20, 1
      %s26 = ssub.s32 %s20, 2
      %s27 = sadd.s32 %s20, 1
      %s28 = ssub.s32 %s20, %s27
      %p29 = scmp.eq.s32.totalorder %s28, 0
      %s31 = sadd.s32 %s30, 1
      %s32 = scalar_select %p29, %s30, %s31
      %p35 = pneg %p29
      %p36 = scmp.eq.s32.totalorder %s20, 1
      %p37 = por %p35, %p36
      %p38 = scmp.ne.s32.totalorder %s30, %s33
      %p39 = scmp.eq.s32.totalorder %s20, 0
      %p40 = por %p38, %p39
      %p41 = scmp.ne.s32.totalorder %s30, %s33
      %p42 = scmp.eq.s32.totalorder %s25, 1
      %p43 = por %p41, %p42
      %p44 = scmp.ne.s32.totalorder %s33, %s34
      %p45 = scmp.eq.s32.totalorder %s25, 0
      %p46 = por %p44, %p45
      %p47 = scmp.ne.s32.totalorder %s33, %s34
      %p48 = scmp.eq.s32.totalorder %s26, 1
      %p49 = por %p47, %p48
      %p51 = scmp.ne.s32.totalorder %s34, %s50
      %p52 = scmp.eq.s32.totalorder %s26, 0
      %p53 = por %p51, %p52
      %s54 = ssub.s32 %s20, %s27
      %p55 = scmp.eq.s32.totalorder %s54, 0
      %s57 = sadd.s32 %s56, 1
      %s58 = scalar_select %p55, %s56, %s57
      %p61 = pneg %p55
      %p62 = scmp.eq.s32.totalorder %s20, 1
      %p63 = por %p61, %p62
      %p64 = scmp.ne.s32.totalorder %s56, %s59
      %p65 = scmp.eq.s32.totalorder %s20, 0
      %p66 = por %p64, %p65
      %p67 = scmp.ne.s32.totalorder %s56, %s59
      %p68 = scmp.eq.s32.totalorder %s25, 1
      %p69 = por %p67, %p68
      %p70 = scmp.ne.s32.totalorder %s59, %s60
      %p71 = scmp.eq.s32.totalorder %s25, 0
      %p72 = por %p70, %p71
      %p73 = scmp.ne.s32.totalorder %s59, %s60
      %p74 = scmp.eq.s32.totalorder %s26, 1
      %p75 = por %p73, %p74
      %p77 = scmp.ne.s32.totalorder %s60, %s76
      %p78 = scmp.eq.s32.totalorder %s26, 0
      %p79 = por %p77, %p78
      %s80 = ssub.s32 %s20, %s27
      %p81 = scmp.eq.s32.totalorder %s80, 0
      %s83 = sadd.s32 %s82, 1
      %s84 = scalar_select %p81, %s82, %s83
      %p87 = pneg %p81
      %p88 = scmp.eq.s32.totalorder %s20, 1
      %p89 = por %p87, %p88
      %p90 = scmp.ne.s32.totalorder %s82, %s85
      %p91 = scmp.eq.s32.totalorder %s20, 0
      %p92 = por %p90, %p91
      %p93 = scmp.ne.s32.totalorder %s82, %s85
      %p94 = scmp.eq.s32.totalorder %s25, 1
      %p95 = por %p93, %p94
      %p96 = scmp.ne.s32.totalorder %s85, %s86
      %p97 = scmp.eq.s32.totalorder %s25, 0
      %p98 = por %p96, %p97
      %p99 = scmp.ne.s32.totalorder %s85, %s86
      %p100 = scmp.eq.s32.totalorder %s26, 1
      %p101 = por %p99, %p100
      %p103 = scmp.ne.s32.totalorder %s86, %s102
      %p104 = scmp.eq.s32.totalorder %s26, 0
      %p105 = por %p103, %p104
      %s107 = sadd.s32 %s106, 1
      %p110 = scmp.eq.s32.totalorder %s20, 1
      %p111 = scmp.ne.s32.totalorder %s106, %s108
      %p112 = scmp.eq.s32.totalorder %s20, 0
      %p113 = por %p111, %p112
      %p114 = scmp.ne.s32.totalorder %s106, %s108
      %p115 = scmp.eq.s32.totalorder %s25, 1
      %p116 = por %p114, %p115
      %p117 = scmp.ne.s32.totalorder %s108, %s109
      %p118 = scmp.eq.s32.totalorder %s25, 0
      %p119 = por %p117, %p118
      %p120 = scmp.ne.s32.totalorder %s108, %s109
      %p121 = scmp.eq.s32.totalorder %s26, 1
      %p122 = por %p120, %p121
      %p124 = scmp.ne.s32.totalorder %s109, %s123
      %p125 = scmp.eq.s32.totalorder %s26, 0
      %p126 = por %p124, %p125
      %s128 = sadd.s32 %s127, 1
      %p131 = scmp.eq.s32.totalorder %s20, 1
      %p132 = scmp.ne.s32.totalorder %s127, %s129
      %p133 = scmp.eq.s32.totalorder %s20, 0
      %p134 = por %p132, %p133
      %p135 = scmp.ne.s32.totalorder %s127, %s129
      %p136 = scmp.eq.s32.totalorder %s25, 1
      %p137 = por %p135, %p136
      %p138 = scmp.ne.s32.totalorder %s129, %s130
      %p139 = scmp.eq.s32.totalorder %s25, 0
      %p140 = por %p138, %p139
      %p141 = scmp.ne.s32.totalorder %s129, %s130
      %p142 = scmp.eq.s32.totalorder %s26, 1
      %p143 = por %p141, %p142
      %p145 = scmp.ne.s32.totalorder %s130, %s144
      %p146 = scmp.eq.s32.totalorder %s26, 0
      %p147 = por %p145, %p146
      %s148 = ssub.s32 %s20, %s27
      %p149 = scmp.eq.s32.totalorder %s148, 0
      %s151 = sadd.s32 %s150, 1
      %s152 = scalar_select %p149, %s150, %s151
      %p155 = pneg %p149
      %p156 = scmp.eq.s32.totalorder %s20, 1
      %p157 = por %p155, %p156
      %p158 = scmp.ne.s32.totalorder %s150, %s153
      %p159 = scmp.eq.s32.totalorder %s20, 0
      %p160 = por %p158, %p159
      %p161 = scmp.ne.s32.totalorder %s150, %s153
      %p162 = scmp.eq.s32.totalorder %s25, 1
      %p163 = por %p161, %p162
      %p164 = scmp.ne.s32.totalorder %s153, %s154
      %p165 = scmp.eq.s32.totalorder %s25, 0
      %p166 = por %p164, %p165
      %p167 = scmp.ne.s32.totalorder %s153, %s154
      %p168 = scmp.eq.s32.totalorder %s26, 1
      %p169 = por %p167, %p168
      %p171 = scmp.ne.s32.totalorder %s154, %s170
      %p172 = scmp.eq.s32.totalorder %s26, 0
      %p173 = por %p171, %p172
      %p174 = scmp.le.s32.totalorder 1, %s20
      %p175 = scmp.lt.s32.totalorder %s20, 3
      %p176 = pnand %p174, %p175
      %p177 = pneg %p176
      // Predicated region
      $region9: #{tpu_custom_call.1} parent=5 // pred_check
        _
      $region10: #{tpu_custom_call.1} parent=5 // pred_check_branch
        %179 = sbr.rel (%p176) target = $region12
      $region11: #{tpu_custom_call.1} parent=5 // pred_region
        %s180 = ssub.s32 %s20, 1
        // Predicated region
        $region13: #{tpu_custom_call.1} parent=11 // pred_check
          %p181 = pneg %p119
        $region14: #{tpu_custom_call.1} parent=11 // pred_check_branch
          %183 = sbr.rel (%p181) target = $region16
        $region15: #{tpu_custom_call.1} parent=11 // pred_region
          _
        $region16: #{tpu_custom_call.1} parent=11 // pred_fallthru
          _
        // Predicated region
        $region17: #{tpu_custom_call.1} parent=11 // pred_check
          %p184 = pneg %p140
        $region18: #{tpu_custom_call.1} parent=11 // pred_check_branch
          %186 = sbr.rel (%p184) target = $region20
        $region19: #{tpu_custom_call.1} parent=11 // pred_region
          _
        $region20: #{tpu_custom_call.1} parent=11 // pred_fallthru
          _
      $region12: #{tpu_custom_call.1} parent=5 // pred_fallthru
        _
      %p187 = scmp.lt.s32.totalorder %s20, 2
      // Predicated region
      $region21: #{tpu_custom_call.1} parent=5 // pred_check
        %p188 = pneg %p187
      $region22: #{tpu_custom_call.1} parent=5 // pred_check_branch
        %190 = sbr.rel (%p188) target = $region24
      $region23: #{tpu_custom_call.1} parent=5 // pred_region
        // Predicated region
        $region25: #{tpu_custom_call.1} parent=23 // pred_check
          %p191 = pneg %p40
        $region26: #{tpu_custom_call.1} parent=23 // pred_check_branch
          %193 = sbr.rel (%p191) target = $region28
        $region27: #{tpu_custom_call.1} parent=23 // pred_region
          %p194 = scmp.lt.s32.totalorder %s20, 1
          %s195 = scalar_select %p194, %s20, 1
          %s196 = smul.addr %s195, 8
          %s197 = scalar_lea.vmem %s0, %s196
        $region28: #{tpu_custom_call.1} parent=23 // pred_fallthru
          _
        // Predicated region
        $region29: #{tpu_custom_call.1} parent=23 // pred_check
          %p198 = pneg %p66
        $region30: #{tpu_custom_call.1} parent=23 // pred_check_branch
          %200 = sbr.rel (%p198) target = $region32
        $region31: #{tpu_custom_call.1} parent=23 // pred_region
          %s201 = sand.u32 %s56, 1
          %s202 = scalar_lea.sflag [#allocation3], %s201
          %s203 = sand.u32 %s56, 1
          %s204 = smul.addr %s203, 128
          %s205 = scalar_lea.vmem [#allocation2], %s204
          %s207 = ssub.s32 2048, 2048
          %208 = vsyncadd %s202, %s207
          %s209 = smul.addr %s20, 16
          %s210 = smul.addr %s209, 128
          %s211 = scalar_lea.hbm %s1, %s210
          %s212 = sshll.u32 %s205, 4
          %s213 = int_to_ptr.vmem [resolvable:$true] %s212
          %218 = dma.hbm_to_vmem [thread:$0]  %s211, 2048, %s213, %s202, 128, 128, 8
        $region32: #{tpu_custom_call.1} parent=23 // pred_fallthru
          _
        // Predicated region
        $region33: #{tpu_custom_call.1} parent=23 // pred_check
          %p219 = pneg %p92
        $region34: #{tpu_custom_call.1} parent=23 // pred_check_branch
          %221 = sbr.rel (%p219) target = $region36
        $region35: #{tpu_custom_call.1} parent=23 // pred_region
          %s222 = sand.u32 %s82, 1
          %s223 = scalar_lea.sflag [#allocation6], %s222
          %s224 = sand.u32 %s82, 1
          %s225 = smul.addr %s224, 128
          %s226 = scalar_lea.vmem [#allocation5], %s225
          %s228 = ssub.s32 2048, 2048
          %229 = vsyncadd %s223, %s228
          %s230 = smul.addr %s20, 16
          %s231 = smul.addr %s230, 128
          %s232 = scalar_lea.hbm %s2, %s231
          %s233 = sshll.u32 %s226, 4
          %s234 = int_to_ptr.vmem [resolvable:$true] %s233
          %239 = dma.hbm_to_vmem [thread:$0]  %s232, 2048, %s234, %s223, 128, 128, 8
        $region36: #{tpu_custom_call.1} parent=23 // pred_fallthru
          _
      $region24: #{tpu_custom_call.1} parent=5 // pred_fallthru
        _
      %p240 = scmp.le.s32.totalorder 1, %s20
      %p241 = scmp.lt.s32.totalorder %s20, 3
      %p242 = pnand %p240, %p241
      %p243 = pneg %p242
      // Predicated region
      $region37: #{tpu_custom_call.1} parent=5 // pred_check
        _
      $region38: #{tpu_custom_call.1} parent=5 // pred_check_branch
        %245 = sbr.rel (%p242) target = $region40
      $region39: #{tpu_custom_call.1} parent=5 // pred_region
        %s246 = ssub.s32 %s20, 1
        %s247 = sand.u32 %s59, 1
        %s248 = scalar_lea.sflag [#allocation3], %s247
        %s249 = sand.u32 %s59, 1
        %s250 = smul.addr %s249, 128
        %s251 = scalar_lea.vmem [#allocation2], %s250
        // Predicated region
        $region41: #{tpu_custom_call.1} parent=39 // pred_check
          %p252 = pneg %p72
        $region42: #{tpu_custom_call.1} parent=39 // pred_check_branch
          %254 = sbr.rel (%p252) target = $region44
        $region43: #{tpu_custom_call.1} parent=39 // pred_region
          %255 = dma.done %s248, 2048
        $region44: #{tpu_custom_call.1} parent=39 // pred_fallthru
          _
        %s256 = sand.u32 %s85, 1
        %s257 = scalar_lea.sflag [#allocation6], %s256
        %s258 = sand.u32 %s85, 1
        %s259 = smul.addr %s258, 128
        %s260 = scalar_lea.vmem [#allocation5], %s259
        // Predicated region
        $region45: #{tpu_custom_call.1} parent=39 // pred_check
          %p261 = pneg %p98
        $region46: #{tpu_custom_call.1} parent=39 // pred_check_branch
          %263 = sbr.rel (%p261) target = $region48
        $region47: #{tpu_custom_call.1} parent=39 // pred_region
          %264 = dma.done %s257, 2048
        $region48: #{tpu_custom_call.1} parent=39 // pred_fallthru
          _
        %p265 = scmp.lt.s32.totalorder %s25, 1
        %s266 = scalar_select %p265, %s25, 1
        %s267 = smul.addr %s266, 8
        %s268 = scalar_lea.vmem %s0, %s267
        %p269 = pneg %p46
        %p270 = pneg %p43
        %s271 = sand.u32 %s59, 1
        %s272 = scalar_lea.sflag [#allocation3], %s271
        %s273 = sand.u32 %s59, 1
        %s274 = smul.addr %s273, 128
        %s275 = scalar_lea.vmem [#allocation2], %s274
        %p276 = pneg %p72
        %p277 = pneg %p69
        %s278 = sand.u32 %s85, 1
        %s279 = scalar_lea.sflag [#allocation6], %s278
        %s280 = sand.u32 %s85, 1
        %s281 = smul.addr %s280, 128
        %s282 = scalar_lea.vmem [#allocation5], %s281
        %p283 = pneg %p98
        %p284 = pneg %p95
        %p285 = pneg %p119
        %p286 = pneg %p116
        %p287 = pneg %p140
        %p288 = pneg %p137
        %p289 = pneg %p166
        %p290 = pneg %p163
        %s291 = sand.u32 %s153, 1
        %s292 = scalar_lea.sflag [#allocation4], %s291
        %s293 = sand.u32 %s153, 1
        %s294 = smul.addr %s293, 8
        %s295 = scalar_lea.vmem [#allocation7], %s294
        %p296 = scmp.lt.s32.totalorder %s25, 1
        %s297 = scalar_select %p296, %s25, 1
        %s298 = smul.addr %s297, 8
        %s299 = scalar_lea.vmem %s0, %s298
        %v300 = vld [vmem:[%s299] sm:$0xff]
        %v301 = vld [vmem:[%s251] sm:$0xff]
        %v302 = vld [vmem:[%s251 + $0x8] sm:$0xff]
        %v303 = vld [vmem:[%s251 + $0x10] sm:$0xff]
        %v304 = vld [vmem:[%s251 + $0x18] sm:$0xff]
        %v305 = vld [vmem:[%s251 + $0x20] sm:$0xff]
        %v306 = vld [vmem:[%s251 + $0x28] sm:$0xff]
        %v307 = vld [vmem:[%s251 + $0x30] sm:$0xff]
        %v308 = vld [vmem:[%s251 + $0x38] sm:$0xff]
        %v309 = vld [vmem:[%s251 + $0x40] sm:$0xff]
        %v310 = vld [vmem:[%s251 + $0x48] sm:$0xff]
        %v311 = vld [vmem:[%s251 + $0x50] sm:$0xff]
        %v312 = vld [vmem:[%s251 + $0x58] sm:$0xff]
        %v313 = vld [vmem:[%s251 + $0x60] sm:$0xff]
        %v314 = vld [vmem:[%s251 + $0x68] sm:$0xff]
        %v315 = vld [vmem:[%s251 + $0x70] sm:$0xff]
        %v316 = vld [vmem:[%s251 + $0x78] sm:$0xff]
        %v317 = vld [vmem:[%s260] sm:$0xff]
        %v318 = vld [vmem:[%s260 + $0x8] sm:$0xff]
        %v319 = vld [vmem:[%s260 + $0x10] sm:$0xff]
        %v320 = vld [vmem:[%s260 + $0x18] sm:$0xff]
        %v321 = vld [vmem:[%s260 + $0x20] sm:$0xff]
        %v322 = vld [vmem:[%s260 + $0x28] sm:$0xff]
        %v323 = vld [vmem:[%s260 + $0x30] sm:$0xff]
        %v324 = vld [vmem:[%s260 + $0x38] sm:$0xff]
        %v325 = vld [vmem:[%s260 + $0x40] sm:$0xff]
        %v326 = vld [vmem:[%s260 + $0x48] sm:$0xff]
        %v327 = vld [vmem:[%s260 + $0x50] sm:$0xff]
        %v328 = vld [vmem:[%s260 + $0x58] sm:$0xff]
        %v329 = vld [vmem:[%s260 + $0x60] sm:$0xff]
        %v330 = vld [vmem:[%s260 + $0x68] sm:$0xff]
        %v331 = vld [vmem:[%s260 + $0x70] sm:$0xff]
        %v332 = vld [vmem:[%s260 + $0x78] sm:$0xff]
        %v333 = vld [vmem:[%s3] sm:$0xff]
        %v334 = vld [vmem:[%s3 + $0x8] sm:$0xff]
        %v335 = vld [vmem:[%s3 + $0x10] sm:$0xff]
        %v336 = vld [vmem:[%s3 + $0x18] sm:$0xff]
        %vm337 = vcmask 261120
        %v339 = vsel %vm337, %v300, 0
        %341 = vmatprep.subr.mxu0 0.0
        %342 = vmatpush1.msra.mxu0 %v333
        %343 = vmatprep.subr.mxu0 0.0
        %344 = vmatpush1.msra.mxu0 %v334
        %345 = vmatprep.subr.mxu0 0.0
        %346 = vmatpush1.msra.mxu0 %v335
        %347 = vmatprep.subr.mxu0 0.0
        %348 = vmatpush1.msra.mxu0 %v336
        %349 = vmatprep.subr.mxu0 0.0
        %350 = vmatpush1.msra.mxu0 0.0
        %351 = vmatprep.subr.mxu0 0.0
        %352 = vmatpush1.msra.mxu0 0.0
        %353 = vmatprep.subr.mxu0 0.0
        %354 = vmatpush1.msra.mxu0 0.0
        %355 = vmatprep.subr.mxu0 0.0
        %356 = vmatpush1.msra.mxu0 0.0
        %357 = vmatprep.subr.mxu0 0.0
        %358 = vmatpush1.msra.mxu0 0.0
        %359 = vmatprep.subr.mxu0 0.0
        %360 = vmatpush1.msra.mxu0 0.0
        %361 = vmatprep.subr.mxu0 0.0
        %362 = vmatpush1.msra.mxu0 0.0
        %363 = vmatprep.subr.mxu0 0.0
        %364 = vmatpush1.msra.mxu0 0.0
        %365 = vmatprep.subr.mxu0 0.0
        %366 = vmatpush1.msra.mxu0 0.0
        %367 = vmatprep.subr.mxu0 0.0
        %368 = vmatpush1.msra.mxu0 0.0
        %369 = vmatprep.subr.mxu0 0.0
        %370 = vmatpush1.msra.mxu0 0.0
        %371 = vmatprep.subr.mxu0 0.0
        %372 = vmatpush1.msra.mxu0 0.0
        %373 = vmatprep.subr.mxu0 0.0
        %374 = vmatpush1.msra.mxu0 0.0
        %375 = vmatprep.subr.mxu0 0.0
        %376 = vmatpush1.msra.mxu0 0.0
        %377 = vmatprep.subr.mxu0 0.0
        %378 = vmatpush1.msra.mxu0 0.0
        %379 = vmatprep.subr.mxu0 0.0
        %380 = vmatpush1.msra.mxu0 0.0
        %381 = vmatprep.subr.mxu0 0.0
        %382 = vmatpush1.msra.mxu0 0.0
        %383 = vmatprep.subr.mxu0 0.0
        %384 = vmatpush1.msra.mxu0 0.0
        %385 = vmatprep.subr.mxu0 0.0
        %386 = vmatpush1.msra.mxu0 0.0
        %387 = vmatprep.subr.mxu0 0.0
        %388 = vmatpush1.msra.mxu0 0.0
        %389 = vmatprep.subr.mxu0 0.0
        %390 = vmatpush1.msra.mxu0 0.0
        %391 = vmatprep.subr.mxu0 0.0
        %392 = vmatpush1.msra.mxu0 0.0
        %393 = vmatprep.subr.mxu0 0.0
        %394 = vmatpush1.msra.mxu0 0.0
        %395 = vmatprep.subr.mxu0 0.0
        %396 = vmatpush1.msra.mxu0 0.0
        %397 = vmatprep.subr.mxu0 0.0
        %398 = vmatpush1.msra.mxu0 0.0
        %399 = vmatprep.subr.mxu0 0.0
        %400 = vmatpush1.msra.mxu0 0.0
        %401 = vmatprep.subr.mxu0 0.0
        %402 = vmatpush1.msra.mxu0 0.0
        %403 = vmatprep.subr.mxu0 0.0
        %404 = vmatpush1.msra.mxu0 0.0
        %405 = vmatprep.mubr.f32.mxu0 0.0
        %406 = vmatmul.mubr.f32.gmra.mrb[0].mxu0 %v339
        %v407 = vpop.f32.mrb[0].mxu0
        %v408 = vadd.f32 0.0, %v407
        %v409 = vpop.f32.mrb[0].mxu0
        %410 = vdwg.mxu0
        %v411 = vld [vmem:[%s4] sm:$0xff]
        %v412 = vld [vmem:[%s4 + $0x8] sm:$0xff]
        %v413 = vld [vmem:[%s4 + $0x10] sm:$0xff]
        %v414 = vld [vmem:[%s4 + $0x18] sm:$0xff]
        %v416 = vsel %vm337, %v301, 0
        %v419 = vsel %vm337, %v302, 0
        %v422 = vsel %vm337, %v303, 0
        %v425 = vsel %vm337, %v304, 0
        %v428 = vsel %vm337, %v305, 0
        %v431 = vsel %vm337, %v306, 0
        %v434 = vsel %vm337, %v307, 0
        %v437 = vsel %vm337, %v308, 0
        %v440 = vsel %vm337, %v309, 0
        %v443 = vsel %vm337, %v310, 0
        %v446 = vsel %vm337, %v311, 0
        %v449 = vsel %vm337, %v312, 0
        %v452 = vsel %vm337, %v313, 0
        %v455 = vsel %vm337, %v314, 0
        %v458 = vsel %vm337, %v315, 0
        %v461 = vsel %vm337, %v316, 0
        %463 = vmatprep.subr.mxu0 0.0
        %464 = vmatpush1.msra.mxu0 %v411
        %465 = vmatprep.subr.mxu0 0.0
        %466 = vmatpush1.msra.mxu0 %v412
        %467 = vmatprep.subr.mxu0 0.0
        %468 = vmatpush1.msra.mxu0 %v413
        %469 = vmatprep.subr.mxu0 0.0
        %470 = vmatpush1.msra.mxu0 %v414
        %471 = vmatprep.subr.mxu0 0.0
        %472 = vmatpush1.msra.mxu0 0.0
        %473 = vmatprep.subr.mxu0 0.0
        %474 = vmatpush1.msra.mxu0 0.0
        %475 = vmatprep.subr.mxu0 0.0
        %476 = vmatpush1.msra.mxu0 0.0
        %477 = vmatprep.subr.mxu0 0.0
        %478 = vmatpush1.msra.mxu0 0.0
        %479 = vmatprep.subr.mxu0 0.0
        %480 = vmatpush1.msra.mxu0 0.0
        %481 = vmatprep.subr.mxu0 0.0
        %482 = vmatpush1.msra.mxu0 0.0
        %483 = vmatprep.subr.mxu0 0.0
        %484 = vmatpush1.msra.mxu0 0.0
        %485 = vmatprep.subr.mxu0 0.0
        %486 = vmatpush1.msra.mxu0 0.0
        %487 = vmatprep.subr.mxu0 0.0
        %488 = vmatpush1.msra.mxu0 0.0
        %489 = vmatprep.subr.mxu0 0.0
        %490 = vmatpush1.msra.mxu0 0.0
        %491 = vmatprep.subr.mxu0 0.0
        %492 = vmatpush1.msra.mxu0 0.0
        %493 = vmatprep.subr.mxu0 0.0
        %494 = vmatpush1.msra.mxu0 0.0
        %495 = vmatprep.subr.mxu0 0.0
        %496 = vmatpush1.msra.mxu0 0.0
        %497 = vmatprep.subr.mxu0 0.0
        %498 = vmatpush1.msra.mxu0 0.0
        %499 = vmatprep.subr.mxu0 0.0
        %500 = vmatpush1.msra.mxu0 0.0
        %501 = vmatprep.subr.mxu0 0.0
        %502 = vmatpush1.msra.mxu0 0.0
        %503 = vmatprep.subr.mxu0 0.0
        %504 = vmatpush1.msra.mxu0 0.0
        %505 = vmatprep.subr.mxu0 0.0
        %506 = vmatpush1.msra.mxu0 0.0
        %507 = vmatprep.subr.mxu0 0.0
        %508 = vmatpush1.msra.mxu0 0.0
        %509 = vmatprep.subr.mxu0 0.0
        %510 = vmatpush1.msra.mxu0 0.0
        %511 = vmatprep.subr.mxu0 0.0
        %512 = vmatpush1.msra.mxu0 0.0
        %513 = vmatprep.subr.mxu0 0.0
        %514 = vmatpush1.msra.mxu0 0.0
        %515 = vmatprep.subr.mxu0 0.0
        %516 = vmatpush1.msra.mxu0 0.0
        %517 = vmatprep.subr.mxu0 0.0
        %518 = vmatpush1.msra.mxu0 0.0
        %519 = vmatprep.subr.mxu0 0.0
        %520 = vmatpush1.msra.mxu0 0.0
        %521 = vmatprep.subr.mxu0 0.0
        %522 = vmatpush1.msra.mxu0 0.0
        %523 = vmatprep.subr.mxu0 0.0
        %524 = vmatpush1.msra.mxu0 0.0
        %525 = vmatprep.subr.mxu0 0.0
        %526 = vmatpush1.msra.mxu0 0.0
        %527 = vmatprep.mubr.f32.mxu0 0.0
        %528 = vmatmul.mubr.f32.gmra.mrb[0].mxu0 %v416
        %v529 = vpop.f32.mrb[0].mxu0
        %v530 = vadd.f32 0.0, %v529
        %v531 = vpop.f32.mrb[0].mxu0
        %532 = vmatprep.mubr.f32.mxu0 0.0
        %533 = vmatmul.mubr.f32.gmra.mrb[0].mxu0 %v419
        %v534 = vpop.f32.mrb[0].mxu0
        %v535 = vadd.f32 0.0, %v534
        %v536 = vpop.f32.mrb[0].mxu0
        %537 = vmatprep.mubr.f32.mxu0 0.0
        %538 = vmatmul.mubr.f32.gmra.mrb[0].mxu0 %v422
        %v539 = vpop.f32.mrb[0].mxu0
        %v540 = vadd.f32 0.0, %v539
        %v541 = vpop.f32.mrb[0].mxu0
        %542 = vmatprep.mubr.f32.mxu0 0.0
        %543 = vmatmul.mubr.f32.gmra.mrb[0].mxu0 %v425
        %v544 = vpop.f32.mrb[0].mxu0
        %v545 = vadd.f32 0.0, %v544
        %v546 = vpop.f32.mrb[0].mxu0
        %547 = vmatprep.mubr.f32.mxu0 0.0
        %548 = vmatmul.mubr.f32.gmra.mrb[0].mxu0 %v428
        %v549 = vpop.f32.mrb[0].mxu0
        %v550 = vadd.f32 0.0, %v549
        %v551 = vpop.f32.mrb[0].mxu0
        %552 = vmatprep.mubr.f32.mxu0 0.0
        %553 = vmatmul.mubr.f32.gmra.mrb[0].mxu0 %v431
        %v554 = vpop.f32.mrb[0].mxu0
        %v555 = vadd.f32 0.0, %v554
        %v556 = vpop.f32.mrb[0].mxu0
        %557 = vmatprep.mubr.f32.mxu0 0.0
        %558 = vmatmul.mubr.f32.gmra.mrb[0].mxu0 %v434
        %v559 = vpop.f32.mrb[0].mxu0
        %v560 = vadd.f32 0.0, %v559
        %v561 = vpop.f32.mrb[0].mxu0
        %562 = vmatprep.mubr.f32.mxu0 0.0
        %563 = vmatmul.mubr.f32.gmra.mrb[0].mxu0 %v437
        %v564 = vpop.f32.mrb[0].mxu0
        %v565 = vadd.f32 0.0, %v564
        %v566 = vpop.f32.mrb[0].mxu0
        %567 = vmatprep.mubr.f32.mxu0 0.0
        %568 = vmatmul.mubr.f32.gmra.mrb[0].mxu0 %v440
        %v569 = vpop.f32.mrb[0].mxu0
        %v570 = vadd.f32 0.0, %v569
        %v571 = vpop.f32.mrb[0].mxu0
        %572 = vmatprep.mubr.f32.mxu0 0.0
        %573 = vmatmul.mubr.f32.gmra.mrb[0].mxu0 %v443
        %v574 = vpop.f32.mrb[0].mxu0
        %v575 = vadd.f32 0.0, %v574
        %v576 = vpop.f32.mrb[0].mxu0
        %577 = vmatprep.mubr.f32.mxu0 0.0
        %578 = vmatmul.mubr.f32.gmra.mrb[0].mxu0 %v446
        %v579 = vpop.f32.mrb[0].mxu0
        %v580 = vadd.f32 0.0, %v579
        %v581 = vpop.f32.mrb[0].mxu0
        %582 = vmatprep.mubr.f32.mxu0 0.0
        %583 = vmatmul.mubr.f32.gmra.mrb[0].mxu0 %v449
        %v584 = vpop.f32.mrb[0].mxu0
        %v585 = vadd.f32 0.0, %v584
        %v586 = vpop.f32.mrb[0].mxu0
        %587 = vmatprep.mubr.f32.mxu0 0.0
        %588 = vmatmul.mubr.f32.gmra.mrb[0].mxu0 %v452
        %v589 = vpop.f32.mrb[0].mxu0
        %v590 = vadd.f32 0.0, %v589
        %v591 = vpop.f32.mrb[0].mxu0
        %592 = vmatprep.mubr.f32.mxu0 0.0
        %593 = vmatmul.mubr.f32.gmra.mrb[0].mxu0 %v455
        %v594 = vpop.f32.mrb[0].mxu0
        %v595 = vadd.f32 0.0, %v594
        %v596 = vpop.f32.mrb[0].mxu0
        %597 = vmatprep.mubr.f32.mxu0 0.0
        %598 = vmatmul.mubr.f32.gmra.mrb[0].mxu0 %v458
        %v599 = vpop.f32.mrb[0].mxu0
        %v600 = vadd.f32 0.0, %v599
        %v601 = vpop.f32.mrb[0].mxu0
        %602 = vmatprep.mubr.f32.mxu0 0.0
        %603 = vmatmul.mubr.f32.gmra.mrb[0].mxu0 %v461
        %v604 = vpop.f32.mrb[0].mxu0
        %v605 = vadd.f32 0.0, %v604
        %v606 = vpop.f32.mrb[0].mxu0
        %607 = vdwg.mxu0
        %v609 = vcombine.high %v408, %v408
        %v611 = vunpack.c.l.s4 1966171168
        %v612 = vunpack.c.0.s8 %v611
        %v613 = vlaneseq
        %v614 = vshrl.u32 %v613, 7
        %v615 = vsub.s32 %v612, %v614
        %v616 = vrot.slane %v408, %v615
        %v618 = vunpack.c.l.s4 1966171168
        %v619 = vunpack.c.0.s8 %v618
        %v620 = vlaneseq
        %v621 = vshrl.u32 %v620, 7
        %v622 = vsub.s32 %v619, %v621
        %v623 = vrot.slane %v609, %v622
        %v624 = vcombine.high %v616, %v616
        %v625 = vcombine.high %v623, %v623
        %v627 = vunpack.c.l.s4 1966171168
        %v628 = vunpack.c.0.s8 %v627
        %v629 = vlaneseq
        %v630 = vshrl.u32 %v629, 7
        %v631 = vsub.s32 %v628, %v630
        %v632 = vrot.slane %v616, %v631
        %v634 = vunpack.c.l.s4 1966171168
        %v635 = vunpack.c.0.s8 %v634
        %v636 = vlaneseq
        %v637 = vshrl.u32 %v636, 7
        %v638 = vsub.s32 %v635, %v637
        %v639 = vrot.slane %v623, %v638
        %v641 = vunpack.c.l.s4 1966171168
        %v642 = vunpack.c.0.s8 %v641
        %v643 = vlaneseq
        %v644 = vshrl.u32 %v643, 7
        %v645 = vsub.s32 %v642, %v644
        %v646 = vrot.slane %v624, %v645
        %v648 = vunpack.c.l.s4 1966171168
        %v649 = vunpack.c.0.s8 %v648
        %v650 = vlaneseq
        %v651 = vshrl.u32 %v650, 7
        %v652 = vsub.s32 %v649, %v651
        %v653 = vrot.slane %v625, %v652
        %v654 = vcombine.high %v632, %v632
        %v655 = vcombine.high %v639, %v639
        %v656 = vcombine.high %v646, %v646
        %v657 = vcombine.high %v653, %v653
        %v658 = vlaneseq
        %v659 = vshrl.u32 %v658, 7
        %v660 = vsub.s32 0, %v659
        %v661 = vrot.slane %v632, %v660
        %v662 = vlaneseq
        %v663 = vshrl.u32 %v662, 7
        %v664 = vsub.s32 0, %v663
        %v665 = vrot.slane %v646, %v664
        %v666 = vlaneseq
        %v667 = vshrl.u32 %v666, 7
        %v668 = vsub.s32 0, %v667
        %v669 = vrot.slane %v654, %v668
        %v670 = vlaneseq
        %v671 = vshrl.u32 %v670, 7
        %v672 = vsub.s32 0, %v671
        %v673 = vrot.slane %v656, %v672
        %v674 = vlaneseq
        %v675 = vshrl.u32 %v674, 7
        %v676 = vsub.s32 0, %v675
        %v677 = vrot.slane %v639, %v676
        %v678 = vlaneseq
        %v679 = vshrl.u32 %v678, 7
        %v680 = vsub.s32 0, %v679
        %v681 = vrot.slane %v653, %v680
        %v682 = vlaneseq
        %v683 = vshrl.u32 %v682, 7
        %v684 = vsub.s32 0, %v683
        %v685 = vrot.slane %v655, %v684
        %v686 = vlaneseq
        %v687 = vshrl.u32 %v686, 7
        %v688 = vsub.s32 0, %v687
        %v689 = vrot.slane %v657, %v688
        %v698 = vmul.f32 %v661, %v530
        %v699 = vmul.f32 %v661, %v535
        %v700 = vmul.f32 %v665, %v540
        %v701 = vmul.f32 %v665, %v545
        %v702 = vmul.f32 %v669, %v550
        %v703 = vmul.f32 %v669, %v555
        %v704 = vmul.f32 %v673, %v560
        %v705 = vmul.f32 %v673, %v565
        %v706 = vmul.f32 %v677, %v570
        %v707 = vmul.f32 %v677, %v575
        %v708 = vmul.f32 %v681, %v580
        %v709 = vmul.f32 %v681, %v585
        %v710 = vmul.f32 %v685, %v590
        %v711 = vmul.f32 %v685, %v595
        %v712 = vmul.f32 %v689, %v600
        %v713 = vmul.f32 %v689, %v605
        %vm714 = vcmask 130048
        %v715 = vsel %vm714, %v698, 0.0
        %716 = vadd.xlane.f32.xlu0 %v715
        %v717 = vpop.xlane.xlu0 %716
        %v718 = vsel %vm714, %v699, 0.0
        %719 = vadd.xlane.f32.xlu0 %v718
        %v720 = vpop.xlane.xlu0 %719
        %v721 = vsel %vm714, %v700, 0.0
        %722 = vadd.xlane.f32.xlu0 %v721
        %v723 = vpop.xlane.xlu0 %722
        %v724 = vsel %vm714, %v701, 0.0
        %725 = vadd.xlane.f32.xlu0 %v724
        %v726 = vpop.xlane.xlu0 %725
        %v727 = vsel %vm714, %v702, 0.0
        %728 = vadd.xlane.f32.xlu0 %v727
        %v729 = vpop.xlane.xlu0 %728
        %v730 = vsel %vm714, %v703, 0.0
        %731 = vadd.xlane.f32.xlu0 %v730
        %v732 = vpop.xlane.xlu0 %731
        %v733 = vsel %vm714, %v704, 0.0
        %734 = vadd.xlane.f32.xlu0 %v733
        %v735 = vpop.xlane.xlu0 %734
        %v736 = vsel %vm714, %v705, 0.0
        %737 = vadd.xlane.f32.xlu0 %v736
        %v738 = vpop.xlane.xlu0 %737
        %v739 = vsel %vm714, %v706, 0.0
        %740 = vadd.xlane.f32.xlu0 %v739
        %v741 = vpop.xlane.xlu0 %740
        %v742 = vsel %vm714, %v707, 0.0
        %743 = vadd.xlane.f32.xlu0 %v742
        %v744 = vpop.xlane.xlu0 %743
        %v745 = vsel %vm714, %v708, 0.0
        %746 = vadd.xlane.f32.xlu0 %v745
        %v747 = vpop.xlane.xlu0 %746
        %v748 = vsel %vm714, %v709, 0.0
        %749 = vadd.xlane.f32.xlu0 %v748
        %v750 = vpop.xlane.xlu0 %749
        %v751 = vsel %vm714, %v710, 0.0
        %752 = vadd.xlane.f32.xlu0 %v751
        %v753 = vpop.xlane.xlu0 %752
        %v754 = vsel %vm714, %v711, 0.0
        %755 = vadd.xlane.f32.xlu0 %v754
        %v756 = vpop.xlane.xlu0 %755
        %v757 = vsel %vm714, %v712, 0.0
        %758 = vadd.xlane.f32.xlu0 %v757
        %v759 = vpop.xlane.xlu0 %758
        %v760 = vsel %vm714, %v713, 0.0
        %761 = vadd.xlane.f32.xlu0 %v760
        %v762 = vpop.xlane.xlu0 %761
        %v779 = vlaneseq
        %v780 = vand.u32 %v779, 127
        %v781 = vlaneseq
        %v782 = vshrl.u32 %v781, 7
        %v783 = vsub.s32 %v780, %v782
        %v784 = vrot.slane %v717, %v783
        %v785 = vadd.s32 %v780, 4294967288
        %v786 = vlaneseq
        %v787 = vshrl.u32 %v786, 7
        %v788 = vsub.s32 %v785, %v787
        %v789 = vrot.slane %v720, %v788
        %vm790 = vcmask 130112
        %v791 = vsel %vm790, %v789, %v784
        %v792 = vlaneseq
        %v793 = vshrl.u32 %v792, 7
        %v794 = vsub.s32 %v780, %v793
        %v795 = vrot.slane %v723, %v794
        %v796 = vlaneseq
        %v797 = vshrl.u32 %v796, 7
        %v798 = vsub.s32 %v785, %v797
        %v799 = vrot.slane %v726, %v798
        %v800 = vsel %vm790, %v799, %v795
        %v801 = vlaneseq
        %v802 = vshrl.u32 %v801, 7
        %v803 = vsub.s32 %v780, %v802
        %v804 = vrot.slane %v729, %v803
        %v805 = vlaneseq
        %v806 = vshrl.u32 %v805, 7
        %v807 = vsub.s32 %v785, %v806
        %v808 = vrot.slane %v732, %v807
        %v809 = vsel %vm790, %v808, %v804
        %v810 = vlaneseq
        %v811 = vshrl.u32 %v810, 7
        %v812 = vsub.s32 %v780, %v811
        %v813 = vrot.slane %v735, %v812
        %v814 = vlaneseq
        %v815 = vshrl.u32 %v814, 7
        %v816 = vsub.s32 %v785, %v815
        %v817 = vrot.slane %v738, %v816
        %v818 = vsel %vm790, %v817, %v813
        %v819 = vlaneseq
        %v820 = vshrl.u32 %v819, 7
        %v821 = vsub.s32 %v780, %v820
        %v822 = vrot.slane %v741, %v821
        %v823 = vlaneseq
        %v824 = vshrl.u32 %v823, 7
        %v825 = vsub.s32 %v785, %v824
        %v826 = vrot.slane %v744, %v825
        %v827 = vsel %vm790, %v826, %v822
        %v828 = vlaneseq
        %v829 = vshrl.u32 %v828, 7
        %v830 = vsub.s32 %v780, %v829
        %v831 = vrot.slane %v747, %v830
        %v832 = vlaneseq
        %v833 = vshrl.u32 %v832, 7
        %v834 = vsub.s32 %v785, %v833
        %v835 = vrot.slane %v750, %v834
        %v836 = vsel %vm790, %v835, %v831
        %v837 = vlaneseq
        %v838 = vshrl.u32 %v837, 7
        %v839 = vsub.s32 %v780, %v838
        %v840 = vrot.slane %v753, %v839
        %v841 = vlaneseq
        %v842 = vshrl.u32 %v841, 7
        %v843 = vsub.s32 %v785, %v842
        %v844 = vrot.slane %v756, %v843
        %v845 = vsel %vm790, %v844, %v840
        %v846 = vlaneseq
        %v847 = vshrl.u32 %v846, 7
        %v848 = vsub.s32 %v780, %v847
        %v849 = vrot.slane %v759, %v848
        %v850 = vlaneseq
        %v851 = vshrl.u32 %v850, 7
        %v852 = vsub.s32 %v785, %v851
        %v853 = vrot.slane %v762, %v852
        %v854 = vsel %vm790, %v853, %v849
        %vm855 = vcmask 1041409
        %v856 = vsel %vm855, %v800, %v791
        %vm857 = vcmask 1042434
        %v858 = vsel %vm857, %v809, %v856
        %vm859 = vcmask 1043459
        %v860 = vsel %vm859, %v818, %v858
        %vm861 = vcmask 1044484
        %v862 = vsel %vm861, %v827, %v860
        %vm863 = vcmask 1045509
        %v864 = vsel %vm863, %v836, %v862
        %vm865 = vcmask 1046534
        %v866 = vsel %vm865, %v845, %v864
        %vm867 = vcmask 1047559
        %v868 = vsel %vm867, %v854, %v866
        %v870 = vsel %vm714, %v868, -inf
        %871 = vmax.xlane.f32.xlu0 %v870
        %v872 = vpop.xlane.xlu0 %871
        %v874 = vlaneseq
        %v875 = vshrl.u32 %v874, 7
        %v876 = vsub.s32 0, %v875
        %v877 = vrot.slane %v872, %v876
        %v878 = vlaneseq
        %v879 = vshrl.u32 %v878, 7
        %v880 = vsub.s32 1, %v879
        %v881 = vrot.slane %v872, %v880
        %v882 = vlaneseq
        %v883 = vshrl.u32 %v882, 7
        %v884 = vsub.s32 2, %v883
        %v885 = vrot.slane %v872, %v884
        %v886 = vlaneseq
        %v887 = vshrl.u32 %v886, 7
        %v888 = vsub.s32 3, %v887
        %v889 = vrot.slane %v872, %v888
        %v890 = vlaneseq
        %v891 = vshrl.u32 %v890, 7
        %v892 = vsub.s32 4, %v891
        %v893 = vrot.slane %v872, %v892
        %v894 = vlaneseq
        %v895 = vshrl.u32 %v894, 7
        %v896 = vsub.s32 5, %v895
        %v897 = vrot.slane %v872, %v896
        %v898 = vlaneseq
        %v899 = vshrl.u32 %v898, 7
        %v900 = vsub.s32 6, %v899
        %v901 = vrot.slane %v872, %v900
        %v902 = vlaneseq
        %v903 = vshrl.u32 %v902, 7
        %v904 = vsub.s32 7, %v903
        %v905 = vrot.slane %v872, %v904
        %v914 = vsub.f32 %v717, %v877
        %v915 = vsub.f32 %v720, %v877
        %v916 = vsub.f32 %v723, %v881
        %v917 = vsub.f32 %v726, %v881
        %v918 = vsub.f32 %v729, %v885
        %v919 = vsub.f32 %v732, %v885
        %v920 = vsub.f32 %v735, %v889
        %v921 = vsub.f32 %v738, %v889
        %v922 = vsub.f32 %v741, %v893
        %v923 = vsub.f32 %v744, %v893
        %v924 = vsub.f32 %v747, %v897
        %v925 = vsub.f32 %v750, %v897
        %v926 = vsub.f32 %v753, %v901
        %v927 = vsub.f32 %v756, %v901
        %v928 = vsub.f32 %v759, %v905
        %v929 = vsub.f32 %v762, %v905
        %v930 = vmul.f32 %v914, 1.442695
        %v931 = vpow.pop %v930
        %v932 = vmul.f32 %v915, 1.442695
        %v933 = vpow.pop %v932
        %v934 = vmul.f32 %v916, 1.442695
        %v935 = vpow.pop %v934
        %v936 = vmul.f32 %v917, 1.442695
        %v937 = vpow.pop %v936
        %v938 = vmul.f32 %v918, 1.442695
        %v939 = vpow.pop %v938
        %v940 = vmul.f32 %v919, 1.442695
        %v941 = vpow.pop %v940
        %v942 = vmul.f32 %v920, 1.442695
        %v943 = vpow.pop %v942
        %v944 = vmul.f32 %v921, 1.442695
        %v945 = vpow.pop %v944
        %v946 = vmul.f32 %v922, 1.442695
        %v947 = vpow.pop %v946
        %v948 = vmul.f32 %v923, 1.442695
        %v949 = vpow.pop %v948
        %v950 = vmul.f32 %v924, 1.442695
        %v951 = vpow.pop %v950
        %v952 = vmul.f32 %v925, 1.442695
        %v953 = vpow.pop %v952
        %v954 = vmul.f32 %v926, 1.442695
        %v955 = vpow.pop %v954
        %v956 = vmul.f32 %v927, 1.442695
        %v957 = vpow.pop %v956
        %v958 = vmul.f32 %v928, 1.442695
        %v959 = vpow.pop %v958
        %v960 = vmul.f32 %v929, 1.442695
        %v961 = vpow.pop %v960
        %978 = vset.pattern.permute.xlu0 0
        %979 = vperm.xlu0 %978, %v931
        %v980 = vpop.permute.xlu0 %979
        %981 = vset.pattern.permute.xlu0 0
        %982 = vperm.xlu0 %981, %v933
        %v983 = vpop.permute.xlu0 %982
        %984 = vset.pattern.permute.xlu0 0
        %985 = vperm.xlu0 %984, %v935
        %v986 = vpop.permute.xlu0 %985
        %987 = vset.pattern.permute.xlu0 0
        %988 = vperm.xlu0 %987, %v937
        %v989 = vpop.permute.xlu0 %988
        %990 = vset.pattern.permute.xlu0 0
        %991 = vperm.xlu0 %990, %v939
        %v992 = vpop.permute.xlu0 %991
        %993 = vset.pattern.permute.xlu0 0
        %994 = vperm.xlu0 %993, %v941
        %v995 = vpop.permute.xlu0 %994
        %996 = vset.pattern.permute.xlu0 0
        %997 = vperm.xlu0 %996, %v943
        %v998 = vpop.permute.xlu0 %997
        %999 = vset.pattern.permute.xlu0 0
        %1000 = vperm.xlu0 %999, %v945
        %v1001 = vpop.permute.xlu0 %1000
        %1002 = vset.pattern.permute.xlu0 0
        %1003 = vperm.xlu0 %1002, %v947
        %v1004 = vpop.permute.xlu0 %1003
        %1005 = vset.pattern.permute.xlu0 0
        %1006 = vperm.xlu0 %1005, %v949
        %v1007 = vpop.permute.xlu0 %1006
        %1008 = vset.pattern.permute.xlu0 0
        %1009 = vperm.xlu0 %1008, %v951
        %v1010 = vpop.permute.xlu0 %1009
        %1011 = vset.pattern.permute.xlu0 0
        %1012 = vperm.xlu0 %1011, %v953
        %v1013 = vpop.permute.xlu0 %1012
        %1014 = vset.pattern.permute.xlu0 0
        %1015 = vperm.xlu0 %1014, %v955
        %v1016 = vpop.permute.xlu0 %1015
        %1017 = vset.pattern.permute.xlu0 0
        %1018 = vperm.xlu0 %1017, %v957
        %v1019 = vpop.permute.xlu0 %1018
        %1020 = vset.pattern.permute.xlu0 0
        %1021 = vperm.xlu0 %1020, %v959
        %v1022 = vpop.permute.xlu0 %1021
        %1023 = vset.pattern.permute.xlu0 0
        %1024 = vperm.xlu0 %1023, %v961
        %v1025 = vpop.permute.xlu0 %1024
        %v1026 = vlaneseq
        %v1027 = vshrl.u32 %v1026, 7
        %v1028 = vsub.s32 %v780, %v1027
        %v1029 = vrot.slane %v980, %v1028
        %v1030 = vlaneseq
        %v1031 = vshrl.u32 %v1030, 7
        %v1032 = vsub.s32 %v785, %v1031
        %v1033 = vrot.slane %v983, %v1032
        %v1034 = vsel %vm790, %v1033, %v1029
        %v1035 = vlaneseq
        %v1036 = vshrl.u32 %v1035, 7
        %v1037 = vsub.s32 %v780, %v1036
        %v1038 = vrot.slane %v986, %v1037
        %v1039 = vlaneseq
        %v1040 = vshrl.u32 %v1039, 7
        %v1041 = vsub.s32 %v785, %v1040
        %v1042 = vrot.slane %v989, %v1041
        %v1043 = vsel %vm790, %v1042, %v1038
        %v1044 = vlaneseq
        %v1045 = vshrl.u32 %v1044, 7
        %v1046 = vsub.s32 %v780, %v1045
        %v1047 = vrot.slane %v992, %v1046
        %v1048 = vlaneseq
        %v1049 = vshrl.u32 %v1048, 7
        %v1050 = vsub.s32 %v785, %v1049
        %v1051 = vrot.slane %v995, %v1050
        %v1052 = vsel %vm790, %v1051, %v1047
        %v1053 = vlaneseq
        %v1054 = vshrl.u32 %v1053, 7
        %v1055 = vsub.s32 %v780, %v1054
        %v1056 = vrot.slane %v998, %v1055
        %v1057 = vlaneseq
        %v1058 = vshrl.u32 %v1057, 7
        %v1059 = vsub.s32 %v785, %v1058
        %v1060 = vrot.slane %v1001, %v1059
        %v1061 = vsel %vm790, %v1060, %v1056
        %v1062 = vlaneseq
        %v1063 = vshrl.u32 %v1062, 7
        %v1064 = vsub.s32 %v780, %v1063
        %v1065 = vrot.slane %v1004, %v1064
        %v1066 = vlaneseq
        %v1067 = vshrl.u32 %v1066, 7
        %v1068 = vsub.s32 %v785, %v1067
        %v1069 = vrot.slane %v1007, %v1068
        %v1070 = vsel %vm790, %v1069, %v1065
        %v1071 = vlaneseq
        %v1072 = vshrl.u32 %v1071, 7
        %v1073 = vsub.s32 %v780, %v1072
        %v1074 = vrot.slane %v1010, %v1073
        %v1075 = vlaneseq
        %v1076 = vshrl.u32 %v1075, 7
        %v1077 = vsub.s32 %v785, %v1076
        %v1078 = vrot.slane %v1013, %v1077
        %v1079 = vsel %vm790, %v1078, %v1074
        %v1080 = vlaneseq
        %v1081 = vshrl.u32 %v1080, 7
        %v1082 = vsub.s32 %v780, %v1081
        %v1083 = vrot.slane %v1016, %v1082
        %v1084 = vlaneseq
        %v1085 = vshrl.u32 %v1084, 7
        %v1086 = vsub.s32 %v785, %v1085
        %v1087 = vrot.slane %v1019, %v1086
        %v1088 = vsel %vm790, %v1087, %v1083
        %v1089 = vlaneseq
        %v1090 = vshrl.u32 %v1089, 7
        %v1091 = vsub.s32 %v780, %v1090
        %v1092 = vrot.slane %v1022, %v1091
        %v1093 = vlaneseq
        %v1094 = vshrl.u32 %v1093, 7
        %v1095 = vsub.s32 %v785, %v1094
        %v1096 = vrot.slane %v1025, %v1095
        %v1097 = vsel %vm790, %v1096, %v1092
        %v1098 = vsel %vm855, %v1043, %v1034
        %v1099 = vsel %vm857, %v1052, %v1098
        %v1100 = vsel %vm859, %v1061, %v1099
        %v1101 = vsel %vm861, %v1070, %v1100
        %v1102 = vsel %vm863, %v1079, %v1101
        %v1103 = vsel %vm865, %v1088, %v1102
        %v1104 = vsel %vm867, %v1097, %v1103
        %v1106 = vsel %vm714, %v1104, 0.0
        %1107 = vadd.xlane.f32.xlu0 %v1106
        %v1108 = vpop.xlane.xlu0 %1107
        %v1110 = vlaneseq
        %v1111 = vshrl.u32 %v1110, 7
        %v1112 = vsub.s32 0, %v1111
        %v1113 = vrot.slane %v1108, %v1112
        %v1114 = vlaneseq
        %v1115 = vshrl.u32 %v1114, 7
        %v1116 = vsub.s32 1, %v1115
        %v1117 = vrot.slane %v1108, %v1116
        %v1118 = vlaneseq
        %v1119 = vshrl.u32 %v1118, 7
        %v1120 = vsub.s32 2, %v1119
        %v1121 = vrot.slane %v1108, %v1120
        %v1122 = vlaneseq
        %v1123 = vshrl.u32 %v1122, 7
        %v1124 = vsub.s32 3, %v1123
        %v1125 = vrot.slane %v1108, %v1124
        %v1126 = vlaneseq
        %v1127 = vshrl.u32 %v1126, 7
        %v1128 = vsub.s32 4, %v1127
        %v1129 = vrot.slane %v1108, %v1128
        %v1130 = vlaneseq
        %v1131 = vshrl.u32 %v1130, 7
        %v1132 = vsub.s32 5, %v1131
        %v1133 = vrot.slane %v1108, %v1132
        %v1134 = vlaneseq
        %v1135 = vshrl.u32 %v1134, 7
        %v1136 = vsub.s32 6, %v1135
        %v1137 = vrot.slane %v1108, %v1136
        %v1138 = vlaneseq
        %v1139 = vshrl.u32 %v1138, 7
        %v1140 = vsub.s32 7, %v1139
        %v1141 = vrot.slane %v1108, %v1140
        %v1150 = vrcp.pop %v1113
        %v1151 = vmul.f32 %v931, %v1150
        %v1152 = vmul.f32 %v933, %v1150
        %v1153 = vrcp.pop %v1117
        %v1154 = vmul.f32 %v935, %v1153
        %v1155 = vmul.f32 %v937, %v1153
        %v1156 = vrcp.pop %v1121
        %v1157 = vmul.f32 %v939, %v1156
        %v1158 = vmul.f32 %v941, %v1156
        %v1159 = vrcp.pop %v1125
        %v1160 = vmul.f32 %v943, %v1159
        %v1161 = vmul.f32 %v945, %v1159
        %v1162 = vrcp.pop %v1129
        %v1163 = vmul.f32 %v947, %v1162
        %v1164 = vmul.f32 %v949, %v1162
        %v1165 = vrcp.pop %v1133
        %v1166 = vmul.f32 %v951, %v1165
        %v1167 = vmul.f32 %v953, %v1165
        %v1168 = vrcp.pop %v1137
        %v1169 = vmul.f32 %v955, %v1168
        %v1170 = vmul.f32 %v957, %v1168
        %v1171 = vrcp.pop %v1141
        %v1172 = vmul.f32 %v959, %v1171
        %v1173 = vmul.f32 %v961, %v1171
        %1175 = vset.pattern.permute.xlu0 0
        %1176 = vperm.xlu0 %1175, %v1151
        %v1177 = vpop.permute.xlu0 %1176
        %1180 = vset.pattern.permute.xlu0 0
        %1181 = vperm.xlu0 %1180, %v1152
        %v1182 = vpop.permute.xlu0 %1181
        %1185 = vset.pattern.permute.xlu0 0
        %1186 = vperm.xlu0 %1185, %v1154
        %v1187 = vpop.permute.xlu0 %1186
        %1190 = vset.pattern.permute.xlu0 0
        %1191 = vperm.xlu0 %1190, %v1155
        %v1192 = vpop.permute.xlu0 %1191
        %1195 = vset.pattern.permute.xlu0 0
        %1196 = vperm.xlu0 %1195, %v1157
        %v1197 = vpop.permute.xlu0 %1196
        %1200 = vset.pattern.permute.xlu0 0
        %1201 = vperm.xlu0 %1200, %v1158
        %v1202 = vpop.permute.xlu0 %1201
        %1205 = vset.pattern.permute.xlu0 0
        %1206 = vperm.xlu0 %1205, %v1160
        %v1207 = vpop.permute.xlu0 %1206
        %1210 = vset.pattern.permute.xlu0 0
        %1211 = vperm.xlu0 %1210, %v1161
        %v1212 = vpop.permute.xlu0 %1211
        %1215 = vset.pattern.permute.xlu0 0
        %1216 = vperm.xlu0 %1215, %v1163
        %v1217 = vpop.permute.xlu0 %1216
        %1220 = vset.pattern.permute.xlu0 0
        %1221 = vperm.xlu0 %1220, %v1164
        %v1222 = vpop.permute.xlu0 %1221
        %1225 = vset.pattern.permute.xlu0 0
        %1226 = vperm.xlu0 %1225, %v1166
        %v1227 = vpop.permute.xlu0 %1226
        %1230 = vset.pattern.permute.xlu0 0
        %1231 = vperm.xlu0 %1230, %v1167
        %v1232 = vpop.permute.xlu0 %1231
        %1235 = vset.pattern.permute.xlu0 0
        %1236 = vperm.xlu0 %1235, %v1169
        %v1237 = vpop.permute.xlu0 %1236
        %1240 = vset.pattern.permute.xlu0 0
        %1241 = vperm.xlu0 %1240, %v1170
        %v1242 = vpop.permute.xlu0 %1241
        %1245 = vset.pattern.permute.xlu0 0
        %1246 = vperm.xlu0 %1245, %v1172
        %v1247 = vpop.permute.xlu0 %1246
        %1250 = vset.pattern.permute.xlu0 0
        %1251 = vperm.xlu0 %1250, %v1173
        %v1252 = vpop.permute.xlu0 %1251
        %v1254 = vmul.f32 %v1177, %v317
        %v1255 = vmul.f32 %v1182, %v318
        %v1256 = vmul.f32 %v1187, %v319
        %v1257 = vmul.f32 %v1192, %v320
        %v1258 = vmul.f32 %v1197, %v321
        %v1259 = vmul.f32 %v1202, %v322
        %v1260 = vmul.f32 %v1207, %v323
        %v1261 = vmul.f32 %v1212, %v324
        %v1262 = vmul.f32 %v1217, %v325
        %v1263 = vmul.f32 %v1222, %v326
        %v1264 = vmul.f32 %v1227, %v327
        %v1265 = vmul.f32 %v1232, %v328
        %v1266 = vmul.f32 %v1237, %v329
        %v1267 = vmul.f32 %v1242, %v330
        %v1268 = vmul.f32 %v1247, %v331
        %v1269 = vmul.f32 %v1252, %v332
        %v1270 = vsel %vm714, %v1254, 0.0
        %v1271 = vsel %vm714, %v1255, 0.0
        %v1272 = vadd.f32 %v1270, %v1271
        %v1273 = vrot.slane %v1272, 4
        %v1274 = vadd.f32 %v1272, %v1273
        %v1275 = vrot.slane %v1274, 2
        %v1276 = vadd.f32 %v1274, %v1275
        %v1277 = vrot.slane %v1276, 1
        %v1278 = vadd.f32 %v1276, %v1277
        %v1279 = vsel %vm714, %v1256, 0.0
        %v1280 = vsel %vm714, %v1257, 0.0
        %v1281 = vadd.f32 %v1279, %v1280
        %v1282 = vrot.slane %v1281, 4
        %v1283 = vadd.f32 %v1281, %v1282
        %v1284 = vrot.slane %v1283, 2
        %v1285 = vadd.f32 %v1283, %v1284
        %v1286 = vrot.slane %v1285, 1
        %v1287 = vadd.f32 %v1285, %v1286
        %v1288 = vsel %vm714, %v1258, 0.0
        %v1289 = vsel %vm714, %v1259, 0.0
        %v1290 = vadd.f32 %v1288, %v1289
        %v1291 = vrot.slane %v1290, 4
        %v1292 = vadd.f32 %v1290, %v1291
        %v1293 = vrot.slane %v1292, 2
        %v1294 = vadd.f32 %v1292, %v1293
        %v1295 = vrot.slane %v1294, 1
        %v1296 = vadd.f32 %v1294, %v1295
        %v1297 = vsel %vm714, %v1260, 0.0
        %v1298 = vsel %vm714, %v1261, 0.0
        %v1299 = vadd.f32 %v1297, %v1298
        %v1300 = vrot.slane %v1299, 4
        %v1301 = vadd.f32 %v1299, %v1300
        %v1302 = vrot.slane %v1301, 2
        %v1303 = vadd.f32 %v1301, %v1302
        %v1304 = vrot.slane %v1303, 1
        %v1305 = vadd.f32 %v1303, %v1304
        %v1306 = vsel %vm714, %v1262, 0.0
        %v1307 = vsel %vm714, %v1263, 0.0
        %v1308 = vadd.f32 %v1306, %v1307
        %v1309 = vrot.slane %v1308, 4
        %v1310 = vadd.f32 %v1308, %v1309
        %v1311 = vrot.slane %v1310, 2
        %v1312 = vadd.f32 %v1310, %v1311
        %v1313 = vrot.slane %v1312, 1
        %v1314 = vadd.f32 %v1312, %v1313
        %v1315 = vsel %vm714, %v1264, 0.0
        %v1316 = vsel %vm714, %v1265, 0.0
        %v1317 = vadd.f32 %v1315, %v1316
        %v1318 = vrot.slane %v1317, 4
        %v1319 = vadd.f32 %v1317, %v1318
        %v1320 = vrot.slane %v1319, 2
        %v1321 = vadd.f32 %v1319, %v1320
        %v1322 = vrot.slane %v1321, 1
        %v1323 = vadd.f32 %v1321, %v1322
        %v1324 = vsel %vm714, %v1266, 0.0
        %v1325 = vsel %vm714, %v1267, 0.0
        %v1326 = vadd.f32 %v1324, %v1325
        %v1327 = vrot.slane %v1326, 4
        %v1328 = vadd.f32 %v1326, %v1327
        %v1329 = vrot.slane %v1328, 2
        %v1330 = vadd.f32 %v1328, %v1329
        %v1331 = vrot.slane %v1330, 1
        %v1332 = vadd.f32 %v1330, %v1331
        %v1333 = vsel %vm714, %v1268, 0.0
        %v1334 = vsel %vm714, %v1269, 0.0
        %v1335 = vadd.f32 %v1333, %v1334
        %v1336 = vrot.slane %v1335, 4
        %v1337 = vadd.f32 %v1335, %v1336
        %v1338 = vrot.slane %v1337, 2
        %v1339 = vadd.f32 %v1337, %v1338
        %v1340 = vrot.slane %v1339, 1
        %v1341 = vadd.f32 %v1339, %v1340
        %v1350 = vsel %vm855, %v1287, %v1278
        %v1351 = vsel %vm857, %v1296, %v1350
        %v1352 = vsel %vm859, %v1305, %v1351
        %v1353 = vsel %vm861, %v1314, %v1352
        %v1354 = vsel %vm863, %v1323, %v1353
        %v1355 = vsel %vm865, %v1332, %v1354
        %v1356 = vsel %vm867, %v1341, %v1355
        %1358 = vst.msk [vmem:[%s295] sm:$0xff] %vm714, %v1356
        %s1359 = sand.u32 %s153, 1
        %s1360 = scalar_lea.sflag [#allocation4], %s1359
        %s1361 = sand.u32 %s153, 1
        %s1362 = smul.addr %s1361, 8
        %s1363 = scalar_lea.vmem [#allocation7], %s1362
        // Predicated region
        $region49: #{tpu_custom_call.1} parent=39 // pred_check
          %p1364 = pneg %p163
        $region50: #{tpu_custom_call.1} parent=39 // pred_check_branch
          %1366 = sbr.rel (%p1364) target = $region52
        $region51: #{tpu_custom_call.1} parent=39 // pred_region
          %s1368 = ssub.s32 128, 128
          %1369 = vsyncadd %s1360, %s1368
          %s1370 = smul.addr %s25, 128
          %s1371 = scalar_lea.hbm %s5, %s1370
          %s1373 = sshll.u32 %s1363, 4
          %s1374 = int_to_ptr.vmem [resolvable:$true] %s1373
          %1376 = dma.vmem_to_hbm [thread:$0]  %s1374, 128, %s1371, %s1360
        $region52: #{tpu_custom_call.1} parent=39 // pred_fallthru
          _
      $region40: #{tpu_custom_call.1} parent=5 // pred_fallthru
        _
      %p1377 = scmp.le.s32.totalorder 2, %s20
      // Predicated region
      $region53: #{tpu_custom_call.1} parent=5 // pred_check
        %p1378 = pneg %p1377
      $region54: #{tpu_custom_call.1} parent=5 // pred_check_branch
        %1380 = sbr.rel (%p1378) target = $region56
      $region55: #{tpu_custom_call.1} parent=5 // pred_region
        %s1381 = ssub.s32 %s20, 2
        // Predicated region
        $region57: #{tpu_custom_call.1} parent=55 // pred_check
          %p1382 = pneg %p169
        $region58: #{tpu_custom_call.1} parent=55 // pred_check_branch
          %1384 = sbr.rel (%p1382) target = $region60
        $region59: #{tpu_custom_call.1} parent=55 // pred_region
          %s1385 = sand.u32 %s154, 1
          %s1386 = scalar_lea.sflag [#allocation4], %s1385
          %s1387 = sand.u32 %s154, 1
          %s1388 = smul.addr %s1387, 8
          %s1389 = scalar_lea.vmem [#allocation7], %s1388
          %1390 = dma.done %s1386, 128
        $region60: #{tpu_custom_call.1} parent=55 // pred_fallthru
          _
      $region56: #{tpu_custom_call.1} parent=5 // pred_fallthru
        _
    $region6: #{tpu_custom_call.1} parent=1 // loop_footer
      %s24 = sadd.s32 1, %s20
    $region7: #{tpu_custom_call.1} parent=1 // loop_footer_branch
      %19 = sbr.rel target = $region3
    $region8: #{tpu_custom_call.1} parent=1 // loop_exit
      _
    %1391 = vsyncpa [#allocation3], 1
    %s1392 = scalar_lea.sflag [#allocation3], 1
    %1393 = vsyncpa %s1392, 1
    %1394 = vsyncpa [#allocation6], 1
    %s1395 = scalar_lea.sflag [#allocation6], 1
    %1396 = vsyncpa %s1395, 1
    %1397 = vsyncpa [#allocation4], 1
    %s1398 = scalar_lea.sflag [#allocation4], 1
    %1399 = vsyncpa %s1398, 1

</llo_original>
